<compile_context>
chip_gen: v5e
topology: v5e:2x2
jax: 0.10.0
libtpu: 0.0.40
codegen_flags: <defaults>
</compile_context>

<pallas_src>
import jax
import jax.numpy as jnp
from jax.experimental import pallas as pl
from jax.experimental.pallas import tpu as pltpu

D_IN, D_H1, D_H2, D_OUT = 5, 12, 8, 1
TILE_B = 1024  # lane tile over batch; always a multiple of 128


def _mlp_kernel(x_ref, w1_ref, b1_ref, w2_ref, b2_ref, w3_ref, b3_ref, o_ref):
    # Layer 1: (12,5) @ (5,TB) + (12,1) -> ReLU
    h1 = jnp.dot(w1_ref[...], x_ref[...], preferred_element_type=jnp.float32)
    h1 = jnp.maximum(h1 + b1_ref[...], 0.0)

    # Layer 2: (8,12) @ (12,TB) + (8,1) -> ReLU
    h2 = jnp.dot(w2_ref[...], h1, preferred_element_type=jnp.float32)
    h2 = jnp.maximum(h2 + b2_ref[...], 0.0)

    # Output: (1,8) @ (8,TB) + (1,1) -> Sigmoid
    logits = jnp.dot(w3_ref[...], h2, preferred_element_type=jnp.float32)
    logits = logits + b3_ref[...]
    denom = 1.0 + jnp.exp(-logits)                   # exp -> EUP
    o_ref[...] = pl.reciprocal(denom, approx=True)   # vrcp -> EUP, frees VALU


def drug_tester_forward(x, params):
    """x: (B, 5) float32 -> (B, 1) float32. params are PyTorch-layout (out,in)/(out,1)."""
    w1, b1 = params["w1"], params["b1"]
    w2, b2 = params["w2"], params["b2"]
    w3, b3 = params["w3"], params["b3"]
    B = x.shape[0]

    # Batch-in-lanes layout; pad batch up to a multiple of the lane tile.
    tile_b = min(TILE_B, ((B + 127) // 128) * 128)
    b_pad = ((B + tile_b - 1) // tile_b) * tile_b
    x_t = jnp.pad(x.astype(jnp.float32).T, ((0, 0), (0, b_pad - B)))  # (5, b_pad)

    grid = (b_pad // tile_b,)

    # Weights/biases: full-array blocks with a constant index map -> VMEM-resident
    # across every grid step (no per-step re-fetch).
    resident = lambda shape: pl.BlockSpec(shape, lambda i: (0, 0))

    weight_bytes = 4 * (D_H1 * D_IN + D_H1 + D_H2 * D_H1 + D_H2 + D_OUT * D_H2 + D_OUT)
    cost = pl.CostEstimate(
        flops=2 * (D_H1 * D_IN + D_H2 * D_H1 + D_OUT * D_H2) * b_pad,
        transcendentals=2 * b_pad,  # exp + reciprocal per element
        bytes_accessed=4 * (D_IN + D_OUT) * b_pad + weight_bytes,
    )

    out_t = pl.pallas_call(
        _mlp_kernel,
        out_shape=jax.ShapeDtypeStruct((D_OUT, b_pad), jnp.float32),
        grid=grid,
        in_specs=[
            pl.BlockSpec((D_IN, tile_b), lambda i: (0, i)),   # x tile, double-buffered
            resident(w1.shape), resident(b1.shape),
            resident(w2.shape), resident(b2.shape),
            resident(w3.shape), resident(b3.shape),
        ],
        out_specs=pl.BlockSpec((D_OUT, tile_b), lambda i: (0, i)),
        compiler_params=pltpu.CompilerParams(dimension_semantics=("parallel",)),
        cost_estimate=cost,
    )(x_t, w1, b1, w2, b2, w3, b3)

    return out_t[:, :B].T  # back to (B, 1), matching the PyTorch module


def init_params(key):
    """Deterministic synthetic init matching nn.Linear: W is (out, in), b is (out, 1).

    Uniform(-1/sqrt(fan_in), 1/sqrt(fan_in)) like torch's default init.
    """
    dims = [(D_IN, D_H1), (D_H1, D_H2), (D_H2, D_OUT)]
    params = {}
    keys = jax.random.split(key, 2 * len(dims))
    for i, (fan_in, fan_out) in enumerate(dims):
        bound = 1.0 / jnp.sqrt(float(fan_in))
        w = jax.random.uniform(keys[2 * i], (fan_out, fan_in),
                               minval=-bound, maxval=bound, dtype=jnp.float32)
        b = jax.random.uniform(keys[2 * i + 1], (fan_out, 1),
                               minval=-bound, maxval=bound, dtype=jnp.float32)
        params[f"w{i + 1}"] = w
        params[f"b{i + 1}"] = b
    return params


def _reference_forward(x, params):
    h1 = jnp.maximum(x @ params["w1"].T + params["b1"].T, 0.0)
    h2 = jnp.maximum(h1 @ params["w2"].T + params["b2"].T, 0.0)
    return jax.nn.sigmoid(h2 @ params["w3"].T + params["b3"].T)


if __name__ == "__main__":
    key = jax.random.PRNGKey(0)
    k_params, k_x1, k_x2 = jax.random.split(key, 3)

    params = init_params(k_params)

    # Small batch (shapes the module implies: 5 drug features -> 1 probability).
    x_small = jax.random.normal(k_x1, (8, D_IN), dtype=jnp.float32)
    out_small = jax.block_until_ready(drug_tester_forward(x_small, params))
    ref_small = _reference_forward(x_small, params)
    assert out_small.shape == (8, 1)
    # approx reciprocal (EUP vrcp) is ~1e-4 relative; 1e-3 tolerance is ample.
    assert jnp.allclose(out_small, ref_small, atol=1e-3, rtol=1e-3)

    # Larger, non-tile-aligned batch to exercise padding and the multi-step
    # double-buffered batch grid (3 grid steps at TILE_B = 1024).
    x_big = jax.random.normal(k_x2, (2560, D_IN), dtype=jnp.float32)
    out_big = jax.block_until_ready(drug_tester_forward(x_big, params))
    ref_big = _reference_forward(x_big, params)
    assert out_big.shape == (2560, 1)
    assert jnp.allclose(out_big, ref_big, atol=1e-3, rtol=1e-3)

    print("KERNEL_OK")
</pallas_src>

<mosaic_0001>
module attributes {stable_mosaic.version = 11 : i64} {
  func.func @_mlp_kernel(%arg0: i32, %arg1: memref<5x128xf32, #tpu.memory_space<vmem>>, %arg2: memref<12x5xf32, #tpu.memory_space<vmem>>, %arg3: memref<12x1xf32, #tpu.memory_space<vmem>>, %arg4: memref<8x12xf32, #tpu.memory_space<vmem>>, %arg5: memref<8x1xf32, #tpu.memory_space<vmem>>, %arg6: memref<1x8xf32, #tpu.memory_space<vmem>>, %arg7: memref<1x1xf32, #tpu.memory_space<vmem>>, %arg8: memref<1x128xf32, #tpu.memory_space<vmem>>) attributes {dimension_semantics = [#tpu.dimension_semantics<parallel>], iteration_bounds = array<i64: 1>, scalar_prefetch = 0 : i64, scratch_operands = 0 : i64, tpu.core_type = #tpu.core_type<tc>, window_params = [{transform_indices = @transform_0, window_bounds = array<i64: 5, 128>}, {pipeline_mode = #tpu.pipeline_mode<synchronous>, transform_indices = @transform_1, window_bounds = array<i64: 12, 5>}, {pipeline_mode = #tpu.pipeline_mode<synchronous>, transform_indices = @transform_2, window_bounds = array<i64: 12, 1>}, {pipeline_mode = #tpu.pipeline_mode<synchronous>, transform_indices = @transform_3, window_bounds = array<i64: 8, 12>}, {pipeline_mode = #tpu.pipeline_mode<synchronous>, transform_indices = @transform_4, window_bounds = array<i64: 8, 1>}, {pipeline_mode = #tpu.pipeline_mode<synchronous>, transform_indices = @transform_5, window_bounds = array<i64: 1, 8>}, {pipeline_mode = #tpu.pipeline_mode<synchronous>, transform_indices = @transform_6, window_bounds = array<i64: 1, 1>}, {transform_indices = @transform_7, window_bounds = array<i64: 1, 128>}]} {
    %c0 = arith.constant 0 : index
    %c0_0 = arith.constant 0 : index
    %0 = vector.load %arg2[%c0, %c0_0] : memref<12x5xf32, #tpu.memory_space<vmem>>, vector<12x5xf32>
    %c0_1 = arith.constant 0 : index
    %c0_2 = arith.constant 0 : index
    %1 = vector.load %arg1[%c0_1, %c0_2] : memref<5x128xf32, #tpu.memory_space<vmem>>, vector<5x128xf32>
    %cst = arith.constant dense<0.000000e+00> : vector<12x128xf32>
    %2 = tpu.matmul %0, %1, %cst {dimension_numbers = #tpu.dot_dimension_numbers<[1], [0], [0], [1], [0, 0, 1, 1], [], []>} : vector<12x5xf32>, vector<5x128xf32>, vector<12x128xf32> -> vector<12x128xf32>
    %c0_3 = arith.constant 0 : index
    %c0_4 = arith.constant 0 : index
    %3 = vector.load %arg3[%c0_3, %c0_4] : memref<12x1xf32, #tpu.memory_space<vmem>>, vector<12x1xf32>
    %4 = vector.broadcast %3 : vector<12x1xf32> to vector<12x128xf32>
    %5 = arith.addf %2, %4 : vector<12x128xf32>
    %cst_5 = arith.constant 0.000000e+00 : f32
    %6 = vector.broadcast %cst_5 : f32 to vector<12x128xf32>
    %7 = arith.maximumf %5, %6 : vector<12x128xf32>
    %c0_6 = arith.constant 0 : index
    %c0_7 = arith.constant 0 : index
    %8 = vector.load %arg4[%c0_6, %c0_7] : memref<8x12xf32, #tpu.memory_space<vmem>>, vector<8x12xf32>
    %cst_8 = arith.constant dense<0.000000e+00> : vector<8x128xf32>
    %9 = tpu.matmul %8, %7, %cst_8 {dimension_numbers = #tpu.dot_dimension_numbers<[1], [0], [0], [1], [0, 0, 1, 1], [], []>} : vector<8x12xf32>, vector<12x128xf32>, vector<8x128xf32> -> vector<8x128xf32>
    %c0_9 = arith.constant 0 : index
    %c0_10 = arith.constant 0 : index
    %10 = vector.load %arg5[%c0_9, %c0_10] : memref<8x1xf32, #tpu.memory_space<vmem>>, vector<8x1xf32>
    %11 = vector.broadcast %10 : vector<8x1xf32> to vector<8x128xf32>
    %12 = arith.addf %9, %11 : vector<8x128xf32>
    %cst_11 = arith.constant 0.000000e+00 : f32
    %13 = vector.broadcast %cst_11 : f32 to vector<8x128xf32>
    %14 = arith.maximumf %12, %13 : vector<8x128xf32>
    %c0_12 = arith.constant 0 : index
    %c0_13 = arith.constant 0 : index
    %15 = vector.load %arg6[%c0_12, %c0_13] : memref<1x8xf32, #tpu.memory_space<vmem>>, vector<1x8xf32>
    %cst_14 = arith.constant dense<0.000000e+00> : vector<1x128xf32>
    %16 = tpu.matmul %15, %14, %cst_14 {dimension_numbers = #tpu.dot_dimension_numbers<[1], [0], [0], [1], [0, 0, 1, 1], [], []>} : vector<1x8xf32>, vector<8x128xf32>, vector<1x128xf32> -> vector<1x128xf32>
    %c0_15 = arith.constant 0 : index
    %c0_16 = arith.constant 0 : index
    %17 = vector.load %arg7[%c0_15, %c0_16] : memref<1x1xf32, #tpu.memory_space<vmem>>, vector<1x1xf32>
    %18 = vector.broadcast %17 : vector<1x1xf32> to vector<1x128xf32>
    %19 = arith.addf %16, %18 : vector<1x128xf32>
    %cst_17 = arith.constant 0.000000e+00 : f32
    %20 = vector.broadcast %cst_17 : f32 to vector<1x128xf32>
    %21 = arith.subf %20, %19 : vector<1x128xf32>
    %22 = math.exp %21 : vector<1x128xf32>
    %cst_18 = arith.constant 1.000000e+00 : f32
    %23 = vector.broadcast %cst_18 : f32 to vector<1x128xf32>
    %24 = arith.addf %23, %22 : vector<1x128xf32>
    %25 = tpu.reciprocal %24 {approx = true} : vector<1x128xf32> -> vector<1x128xf32>
    %c0_19 = arith.constant 0 : index
    %c0_20 = arith.constant 0 : index
    %26 = vector.load %arg8[%c0_19, %c0_20] : memref<1x128xf32, #tpu.memory_space<vmem>>, vector<1x128xf32>
    tpu.vector_store %arg8[%c0_19, %c0_20], %25 {strides = array<i32>} : memref<1x128xf32, #tpu.memory_space<vmem>>, vector<1x128xf32>,
    return
  }
  func.func @transform_0(%arg0: i32) -> (i32, i32) {
    %c0_i32 = arith.constant 0 : i32
    %c0_i32_0 = arith.constant 0 : i32
    return %c0_i32, %arg0 : i32, i32
  }
  func.func @transform_1(%arg0: i32) -> (i32, i32) {
    %c0_i32 = arith.constant 0 : i32
    %c0_i32_0 = arith.constant 0 : i32
    %c0_i32_1 = arith.constant 0 : i32
    return %c0_i32, %c0_i32_0 : i32, i32
  }
  func.func @transform_2(%arg0: i32) -> (i32, i32) {
    %c0_i32 = arith.constant 0 : i32
    %c0_i32_0 = arith.constant 0 : i32
    %c0_i32_1 = arith.constant 0 : i32
    return %c0_i32, %c0_i32_0 : i32, i32
  }
  func.func @transform_3(%arg0: i32) -> (i32, i32) {
    %c0_i32 = arith.constant 0 : i32
    %c0_i32_0 = arith.constant 0 : i32
    %c0_i32_1 = arith.constant 0 : i32
    return %c0_i32, %c0_i32_0 : i32, i32
  }
  func.func @transform_4(%arg0: i32) -> (i32, i32) {
    %c0_i32 = arith.constant 0 : i32
    %c0_i32_0 = arith.constant 0 : i32
    %c0_i32_1 = arith.constant 0 : i32
    return %c0_i32, %c0_i32_0 : i32, i32
  }
  func.func @transform_5(%arg0: i32) -> (i32, i32) {
    %c0_i32 = arith.constant 0 : i32
    %c0_i32_0 = arith.constant 0 : i32
    %c0_i32_1 = arith.constant 0 : i32
    return %c0_i32, %c0_i32_0 : i32, i32
  }
  func.func @transform_6(%arg0: i32) -> (i32, i32) {
    %c0_i32 = arith.constant 0 : i32
    %c0_i32_0 = arith.constant 0 : i32
    %c0_i32_1 = arith.constant 0 : i32
    return %c0_i32, %c0_i32_0 : i32, i32
  }
  func.func @transform_7(%arg0: i32) -> (i32, i32) {
    %c0_i32 = arith.constant 0 : i32
    %c0_i32_0 = arith.constant 0 : i32
    return %c0_i32, %arg0 : i32, i32
  }
}

</mosaic_0001>

<llo_original>
// kernel: tpu_custom_call.1
$region0: #{tpu_custom_call.1}
  #allocation0 [shape = 'u32[]', space=smem, size = 0x4, offset = 0x4, fixed_abs, tag = 'smem constant byte address 0x4 - core index']
  #allocation1 [shape = 'u32[72,128]{1,0:T(1,128)}', space=vmem, size = 0x9000, scoped, tag = 'internal scratch']
  #allocation2 [shape = 'f32[1,1]{1,0:T(1,128)S(1)}', space=vmem, size = 0x200, scoped, tag = 'scoped memory for tpu_custom_call.1']
  %s0 = inlined_call_operand.vmem [shape: f32[5,128], index: 0, kind: input, shape index: {}]
  %s1 = inlined_call_operand.vmem [shape: f32[12,5], index: 1, kind: input, shape index: {}]
  %s2 = inlined_call_operand.vmem [shape: f32[12,1], index: 2, kind: input, shape index: {}]
  %s3 = inlined_call_operand.vmem [shape: f32[8,12], index: 3, kind: input, shape index: {}]
  %s4 = inlined_call_operand.vmem [shape: f32[8,1], index: 4, kind: input, shape index: {}]
  %s5 = inlined_call_operand.vmem [shape: f32[1,8], index: 5, kind: input, shape index: {}]
  %s6 = inlined_call_operand.<no memory space> [shape: f32[1,1], index: 6, kind: input, shape index: {}]
  %s7 = inlined_call_operand.hbm [shape: f32[1,128], index: 7, kind: output, shape index: {}]
  %s8 = sld [smem:[#allocation0]]
  $region38: #{tpu_custom_call.1} parent=0
    _
  %s10 = ssub.s32 1, %s8
  %s11 = scalar_select 0, %s10, %s8
  %v12 = vstv %s6
  %13 = vst [vmem:[#allocation2] sm:$0x1] %v12
  $region1: #{tpu_custom_call.1} parent=0
    #allocation3 [shape = 'u8[512]{0}', space=vmem, size = 0x400, scoped, tag = 'output window, operand 0, single buffered']
    #allocation4 [shape = 's32[1]{0}', space=sflag, size = 0x4, scoped, tag = 'scoped memory for tpu_custom_call.1']
    %14 = vsyncpa [#allocation4], 0
    // Predicated region
    $region2: #{tpu_custom_call.1} parent=1 // pred_check
      _
    $region3: #{tpu_custom_call.1} parent=1 // pred_check_branch
      %16 = sbr.rel (0) target = $region5
    $region4: #{tpu_custom_call.1} parent=1 // pred_region
      _
    $region5: #{tpu_custom_call.1} parent=1 // pred_fallthru
      _
    // Predicated region
    $region6: #{tpu_custom_call.1} parent=1 // pred_check
      _
    $region7: #{tpu_custom_call.1} parent=1 // pred_check_branch
      %18 = sbr.rel (0) target = $region9
    $region8: #{tpu_custom_call.1} parent=1 // pred_region
      _
    $region9: #{tpu_custom_call.1} parent=1 // pred_fallthru
      _
    // Predicated region
    $region10: #{tpu_custom_call.1} parent=1 // pred_check
      _
    $region11: #{tpu_custom_call.1} parent=1 // pred_check_branch
      %20 = sbr.rel (0) target = $region13
    $region12: #{tpu_custom_call.1} parent=1 // pred_region
      _
    $region13: #{tpu_custom_call.1} parent=1 // pred_fallthru
      _
    // Predicated region
    $region14: #{tpu_custom_call.1} parent=1 // pred_check
      _
    $region15: #{tpu_custom_call.1} parent=1 // pred_check_branch
      %22 = sbr.rel (0) target = $region17
    $region16: #{tpu_custom_call.1} parent=1 // pred_region
      _
    $region17: #{tpu_custom_call.1} parent=1 // pred_fallthru
      _
    // Predicated region
    $region18: #{tpu_custom_call.1} parent=1 // pred_check
      _
    $region19: #{tpu_custom_call.1} parent=1 // pred_check_branch
      %24 = sbr.rel (0) target = $region21
    $region20: #{tpu_custom_call.1} parent=1 // pred_region
      _
    $region21: #{tpu_custom_call.1} parent=1 // pred_fallthru
      _
    // Predicated region
    $region22: #{tpu_custom_call.1} parent=1 // pred_check
      _
    $region23: #{tpu_custom_call.1} parent=1 // pred_check_branch
      %26 = sbr.rel (0) target = $region25
    $region24: #{tpu_custom_call.1} parent=1 // pred_region
      _
    $region25: #{tpu_custom_call.1} parent=1 // pred_fallthru
      _
    // Predicated region
    $region26: #{tpu_custom_call.1} parent=1 // pred_check
      _
    $region27: #{tpu_custom_call.1} parent=1 // pred_check_branch
      %28 = sbr.rel (0) target = $region29
    $region28: #{tpu_custom_call.1} parent=1 // pred_region
      _
    $region29: #{tpu_custom_call.1} parent=1 // pred_fallthru
      _
    %v29 = vld [vmem:[%s1] sm:$0xff]
    %v30 = vld [vmem:[%s1 + $0x8] sm:$0xf]
    %v31 = vld [vmem:[%s0] sm:$0x1f]
    %v32 = vld [vmem:[%s2] sm:$0xff]
    %v33 = vld [vmem:[%s2 + $0x8] sm:$0xf]
    %35 = vset.pattern.permute.xlu0 0
    %36 = vperm.xlu0 %35, %v32
    %v37 = vpop.permute.xlu0 %36
    %40 = vset.pattern.permute.xlu0 0
    %41 = vperm.xlu0 %40, %v33
    %v42 = vpop.permute.xlu0 %41
    %vm44 = vcmask 39936
    %v46 = vsel %vm44, %v29, 0
    %v49 = vsel %vm44, %v30, 0
    %vm51 = vcmask 1044480
    %v53 = vsel %vm51, %v31, 0
    %55 = vmatpush.msra.mxu0 0.0
    %56 = vmatpush.msra.mxu0 0.0
    %57 = vmatpush.msra.mxu0 0.0
    %58 = vmatpush.msra.mxu0 0.0
    %59 = vmatpush.msra.mxu0 0.0
    %60 = vmatpush.msra.mxu0 0.0
    %61 = vmatpush.msra.mxu0 0.0
    %62 = vmatpush.msra.mxu0 0.0
    %63 = vmatpush.msra.mxu0 0.0
    %64 = vmatpush.msra.mxu0 0.0
    %65 = vmatpush.msra.mxu0 0.0
    %66 = vmatpush.msra.mxu0 0.0
    %67 = vmatpush.msra.mxu0 0.0
    %68 = vmatpush.msra.mxu0 0.0
    %69 = vmatpush.msra.mxu0 0.0
    %70 = vmatpush.msra.mxu0 %v53
    %71 = vmatmul.f32.gmra.mxu0 %v46
    %v72 = vpop.f32.mrf.mxu0
    %v73 = vadd.f32 %v37, %v72
    %74 = vmatmul.f32.gmra.mxu0 %v49
    %v75 = vpop.f32.mrf.mxu0
    %v76 = vadd.f32 %v42, %v75
    %77 = vdwg.mxu0
    %v78 = vmax.f32 %v73, 0.0
    %v79 = vmax.f32 %v76, 0.0
    %v80 = vld [vmem:[%s3] sm:$0xff]
    %v81 = vld [vmem:[%s4] sm:$0xff]
    %83 = vset.pattern.permute.xlu0 0
    %84 = vperm.xlu0 %83, %v81
    %v85 = vpop.permute.xlu0 %84
    %vm87 = vcmask 97280
    %v89 = vsel %vm87, %v80, 0
    %vm91 = vcmask 1043456
    %v93 = vsel %vm91, %v79, 0
    %95 = vmatpush.msra.mxu0 0.0
    %96 = vmatpush.msra.mxu0 0.0
    %97 = vmatpush.msra.mxu0 0.0
    %98 = vmatpush.msra.mxu0 0.0
    %99 = vmatpush.msra.mxu0 0.0
    %100 = vmatpush.msra.mxu0 0.0
    %101 = vmatpush.msra.mxu0 0.0
    %102 = vmatpush.msra.mxu0 0.0
    %103 = vmatpush.msra.mxu0 0.0
    %104 = vmatpush.msra.mxu0 0.0
    %105 = vmatpush.msra.mxu0 0.0
    %106 = vmatpush.msra.mxu0 0.0
    %107 = vmatpush.msra.mxu0 0.0
    %108 = vmatpush.msra.mxu0 0.0
    %109 = vmatpush.msra.mxu0 %v93
    %110 = vmatpush.msra.mxu0 %v78
    %111 = vmatmul.f32.gmra.mxu0 %v89
    %v112 = vpop.f32.mrf.mxu0
    %v113 = vadd.f32 %v85, %v112
    %114 = vdwg.mxu0
    %v115 = vmax.f32 %v113, 0.0
    %v116 = vld [vmem:[%s5] sm:$0x1]
    %v117 = vld [vmem:[#allocation2] sm:$0x1]
    %119 = vset.pattern.permute.xlu0 0
    %120 = vperm.xlu0 %119, %v117
    %v121 = vpop.permute.xlu0 %120
    %v123 = vperm.slane %v121, 0
    %vm124 = vcmask 64512
    %v126 = vsel %vm124, %v116, 0
    %128 = vmatpush.msra.mxu0 0.0
    %129 = vmatpush.msra.mxu0 0.0
    %130 = vmatpush.msra.mxu0 0.0
    %131 = vmatpush.msra.mxu0 0.0
    %132 = vmatpush.msra.mxu0 0.0
    %133 = vmatpush.msra.mxu0 0.0
    %134 = vmatpush.msra.mxu0 0.0
    %135 = vmatpush.msra.mxu0 0.0
    %136 = vmatpush.msra.mxu0 0.0
    %137 = vmatpush.msra.mxu0 0.0
    %138 = vmatpush.msra.mxu0 0.0
    %139 = vmatpush.msra.mxu0 0.0
    %140 = vmatpush.msra.mxu0 0.0
    %141 = vmatpush.msra.mxu0 0.0
    %142 = vmatpush.msra.mxu0 0.0
    %143 = vmatpush.msra.mxu0 %v115
    %144 = vmatmul.f32.gmra.mxu0 %v126
    %v145 = vpop.f32.mrf.mxu0
    %v146 = vadd.f32 %v123, %v145
    %147 = vdwg.mxu0
    %v148 = vsub.f32 0.0, %v146
    %v149 = vmul.f32 %v148, 1.442695
    %v150 = vpow.pop %v149
    %v151 = vadd.f32 %v150, 1.0
    %v152 = vrcp.pop %v151
    %153 = vst [vmem:[#allocation3] sm:$0x1] %v152
    // Predicated region
    $region30: #{tpu_custom_call.1} parent=1 // pred_check
      _
    $region31: #{tpu_custom_call.1} parent=1 // pred_check_branch
      %155 = sbr.rel (0) target = $region33
    $region32: #{tpu_custom_call.1} parent=1 // pred_region
      %157 = vsyncadd [#allocation4], 0
      %s159 = sshll.u32 [#allocation3], 4
      %s160 = int_to_ptr.vmem [resolvable:$true] %s159
      %s161 = sshll.u32 %s7, 4
      %s162 = int_to_ptr.hbm [resolvable:$true] %s161
      %164 = dma.vmem_to_hbm [thread:$0]  %s160, 16, %s162, [#allocation4]
    $region33: #{tpu_custom_call.1} parent=1 // pred_fallthru
      _
    // Predicated region
    $region34: #{tpu_custom_call.1} parent=1 // pred_check
      _
    $region35: #{tpu_custom_call.1} parent=1 // pred_check_branch
      %166 = sbr.rel (0) target = $region37
    $region36: #{tpu_custom_call.1} parent=1 // pred_region
      %168 = dma.done [#allocation4], 16
    $region37: #{tpu_custom_call.1} parent=1 // pred_fallthru
      _
    %169 = vsyncpa [#allocation4], 1

</llo_original>
